<compile_context>
chip_gen: v5e
topology: v5e:2x2
jax: 0.10.0
libtpu: 0.0.40
codegen_flags: <defaults>
</compile_context>

<pallas_src>
import functools

import jax
import jax.numpy as jnp
from jax import lax
from jax.experimental import pallas as pl
from jax.experimental.pallas import tpu as pltpu

_LN_EPS = 1e-12


def _vmem_limit_bytes():
    """Generation-aware VMEM limit: ~75% of physical, clamped to a safe range."""
    cap = None
    try:
        cap = getattr(pltpu.get_tpu_info(), "vmem_capacity_bytes", None)
    except Exception:
        cap = None
    if not cap:
        cap = 64 * 1024 * 1024          # conservative fallback (safe on v7x too)
    return max(32 * 1024 * 1024, min(int(cap * 0.75), 100 * 1024 * 1024))


def _resident(shape):
    """Whole-array block whose block index never changes -> stays resident in VMEM."""
    return pl.BlockSpec(shape, lambda *_: (0,) * len(shape))


def _pick_block(s, candidates=(256, 128)):
    """Largest MXU-friendly row tile that divides S, else the full (small) S."""
    for c in candidates:
        if s % c == 0:
            return c
    return s


# ---------------------------------------------------------------------------
# Pass 1: fused K/V projection, emitted head-major.
# ---------------------------------------------------------------------------
def kv_proj_kernel(x_ref, wkv_ref, bkv_ref, k_ref, v_ref, *, n_head):
    f32 = jnp.float32
    _, rows, D = x_ref.shape
    d_head = D // n_head

    x = x_ref[0].astype(wkv_ref.dtype)                      # MXU operands in weight dtype
    kv = jnp.dot(x, wkv_ref[...], preferred_element_type=f32) + bkv_ref[...].astype(f32)

    def to_heads(t):                                        # (rows, D) -> (h, rows, dh)
        return jnp.transpose(t.reshape(rows, n_head, d_head), (1, 0, 2))

    # One relayout per K/V tile here instead of one per (b, qi, ki) step in pass 2.
    k_ref[0, 0] = to_heads(kv[:, :D]).astype(k_ref.dtype)
    v_ref[0, 0] = to_heads(kv[:, D:]).astype(v_ref.dtype)


# ---------------------------------------------------------------------------
# Pass 2: Q proj + flash attention + output projection + LN1 + FFN + LN2.
# ---------------------------------------------------------------------------
def attn_ffn_kernel(x_ref, k_ref, v_ref, mask_ref,
                    wq_ref, wo_ref, w1_ref, w2_ref, vec_ref, b1_ref,
                    o_ref,
                    qh_ref, m_ref, l_ref, acc_ref,
                    *, n_head, kv_resident):
    f32 = jnp.float32
    ki = pl.program_id(2)

    _, blk_q, D = x_ref.shape
    d_head = D // n_head
    scale = 1.0 / (d_head ** 0.5)

    # ---- init (first key tile): project Q once per (b, qi), fold in the scale,
    # ---- split into heads, reset running stats. --------------------------------
    @pl.when(ki == 0)
    def _init():
        xq = x_ref[0].astype(wq_ref.dtype)
        q = jnp.dot(xq, wq_ref[...], preferred_element_type=f32)
        q = (q + vec_ref[0:1].astype(f32)) * scale          # scale folded into Q once
        qh_ref[...] = jnp.transpose(
            q.reshape(blk_q, n_head, d_head), (1, 0, 2)).astype(qh_ref.dtype)
        m_ref[...] = jnp.full_like(m_ref, -jnp.inf)
        l_ref[...] = jnp.zeros_like(l_ref)
        acc_ref[...] = jnp.zeros_like(acc_ref)

    # ---- one key/value tile: already head-major, no per-step relayout ----------
    kv_idx = ki if kv_resident else 0
    kh = k_ref[0, kv_idx]                                   # (h, bk, dh)
    vh = v_ref[0, kv_idx]

    # QK^T contracting d_head, heads as the batch dim (no explicit K transpose).
    s = lax.dot_general(qh_ref[...].astype(kh.dtype), kh,
                        (((2,), (2,)), ((0,), (0,))),
                        preferred_element_type=f32)         # (h, bq, bk)
    masked = mask_ref[0].astype(jnp.int32) == 0             # int8 mask tile, once per step
    s = jnp.where(masked[None, :, :], f32(-10000.0), s)     # fill semantics match reference

    m_prev = m_ref[...]
    m_new = jnp.maximum(m_prev, jnp.max(s, axis=-1, keepdims=True))
    alpha = jnp.exp(m_prev - m_new)
    p = jnp.exp(s - m_new)
    l_ref[...] = alpha * l_ref[...] + jnp.sum(p, axis=-1, keepdims=True)
    pv = lax.dot_general(p.astype(vh.dtype), vh, (((2,), (1,)), ((0,), (0,))),
                         preferred_element_type=f32)        # (h, bq, dh)
    acc_ref[...] = alpha * acc_ref[...] + pv
    m_ref[...] = m_new

    # ---- epilogue on the last key tile: out-proj + LN1 + FFN + LN2 -------------
    @pl.when(ki == pl.num_programs(2) - 1)
    def _finalize():
        vec = vec_ref[...].astype(f32)   # (7, D): bq / bo / g1 / be1 / b2 / g2 / be2
        bo, g1, be1 = vec[1:2], vec[2:3], vec[3:4]
        b2, g2, be2 = vec[4:5], vec[5:6], vec[6:7]

        inv_l = pl.reciprocal(l_ref[...], approx=True)      # EUP slot, effectively free
        ctx = acc_ref[...] * inv_l                          # (h, bq, dh)
        attn = jnp.transpose(ctx, (1, 0, 2)).reshape(blk_q, D)   # merge heads
        attn = jnp.dot(attn.astype(wo_ref.dtype), wo_ref[...],
                       preferred_element_type=f32) + bo

        # dropout1 / dropout2 / ffn-internal dropout are identities (eval mode).
        y = x_ref[0].astype(f32) + attn
        mu = jnp.mean(y, axis=-1, keepdims=True)
        var = jnp.mean(jnp.square(y - mu), axis=-1, keepdims=True)
        y = (y - mu) * lax.rsqrt(var + _LN_EPS) * g1 + be1

        h1 = jnp.dot(y.astype(w1_ref.dtype), w1_ref[...],
                     preferred_element_type=f32) + b1_ref[...].astype(f32)
        h1 = jnp.maximum(h1, 0.0)
        ffn = jnp.dot(h1.astype(w2_ref.dtype), w2_ref[...],
                      preferred_element_type=f32) + b2

        z = y + ffn
        mu2 = jnp.mean(z, axis=-1, keepdims=True)
        var2 = jnp.mean(jnp.square(z - mu2), axis=-1, keepdims=True)
        z = (z - mu2) * lax.rsqrt(var2 + _LN_EPS) * g2 + be2
        o_ref[0] = z.astype(o_ref.dtype)


# ---------------------------------------------------------------------------
# Wrapper.
# ---------------------------------------------------------------------------
def encoder_block(x, src_mask, params, n_head, *,
                  block_q=None, block_kv=None, kv_dtype=None):
    B, S, D = x.shape
    H = params["w1"].shape[1]
    assert D % n_head == 0
    d_head = D // n_head

    bq = block_q or _pick_block(S)
    bk = block_kv or _pick_block(S)
    if block_q is None:
        # v7x has 2 TensorCores per chip: keep the parallel grid extent >= 2.
        while B * (S // bq) < 2 and bq > 8 and S % (bq // 2) == 0:
            bq //= 2
    assert S % bq == 0 and S % bk == 0
    n_kv = S // bk

    kv_dtype = kv_dtype or x.dtype       # bf16 halves K/V HBM traffic if desired
    vmem_limit = _vmem_limit_bytes()

    # Mask is streamed as int8 (4x less DMA than f32). Callers should pass a
    # bool/int8 mask; widen-only-if-needed keeps general {0,1} mask semantics.
    if src_mask.dtype.itemsize > 1:
        src_mask = (src_mask != 0).astype(jnp.int8)

    def r1d(a, n):
        return a.reshape(1, n)

    # Fused K/V projection weight + bias; packed small vectors for pass 2.
    wkv = jnp.concatenate([params["wk"], params["wv"]], axis=1)              # (D, 2D)
    bkv = jnp.concatenate([r1d(params["bk"], D), r1d(params["bv"], D)], axis=1)
    vecs = jnp.concatenate(
        [r1d(params["bq"], D), r1d(params["bo"], D),
         r1d(params["gamma1"], D), r1d(params["beta1"], D),
         r1d(params["b2"], D), r1d(params["gamma2"], D), r1d(params["beta2"], D)],
        axis=0)                                                              # (7, D)

    # ---- pass 1: fused K/V projection, head-major output --------------------
    kv_shape = jax.ShapeDtypeStruct((B, n_kv, n_head, bk, d_head), kv_dtype)
    k, v = pl.pallas_call(
        functools.partial(kv_proj_kernel, n_head=n_head),
        grid=(B, n_kv),
        out_shape=[kv_shape, kv_shape],
        in_specs=[
            pl.BlockSpec((1, bk, D), lambda b, i: (b, i, 0)),
            _resident((D, 2 * D)),
            _resident((1, 2 * D)),
        ],
        out_specs=[pl.BlockSpec((1, 1, n_head, bk, d_head),
                                lambda b, i: (b, i, 0, 0, 0))] * 2,
        compiler_params=pltpu.CompilerParams(
            dimension_semantics=("parallel", "parallel"),
            vmem_limit_bytes=vmem_limit),
    )(x, wkv, bkv)

    # Make K/V per-batch resident when they fit (DMA once per batch instead of
    # once per query tile); otherwise stream (1,1,h,bk,dh) tiles per step.
    kv_bytes = 2 * 2 * S * D * jnp.dtype(kv_dtype).itemsize   # K+V, double-buffered
    kv_resident = kv_bytes <= int(0.35 * vmem_limit)
    if kv_resident:
        kv_spec = pl.BlockSpec((1, n_kv, n_head, bk, d_head),
                               lambda b, qi, ki: (b, 0, 0, 0, 0))
    else:
        kv_spec = pl.BlockSpec((1, 1, n_head, bk, d_head),
                               lambda b, qi, ki: (b, ki, 0, 0, 0))

    # ---- pass 2: Q proj + flash attention + out-proj + LN1 + FFN + LN2 ------
    kernel = functools.partial(attn_ffn_kernel, n_head=n_head, kv_resident=kv_resident)
    return pl.pallas_call(
        kernel,
        grid=(B, S // bq, n_kv),
        out_shape=jax.ShapeDtypeStruct((B, S, D), x.dtype),
        in_specs=[
            pl.BlockSpec((1, bq, D), lambda b, qi, ki: (b, qi, 0)),    # x (Q src + residual)
            kv_spec,                                                   # k (head-major)
            kv_spec,                                                   # v (head-major)
            pl.BlockSpec((1, bq, bk), lambda b, qi, ki: (b, qi, ki)),  # int8 mask tile
            _resident((D, D)),   # wq
            _resident((D, D)),   # wo
            _resident((D, H)),   # w1
            _resident((H, D)),   # w2
            _resident((7, D)),   # packed bq / bo / gamma1 / beta1 / b2 / gamma2 / beta2
            _resident((1, H)),   # b1
        ],
        out_specs=pl.BlockSpec((1, bq, D), lambda b, qi, ki: (b, qi, 0)),
        scratch_shapes=[
            pltpu.VMEM((n_head, bq, d_head), kv_dtype),          # q, head-major, pre-scaled
            pltpu.VMEM((n_head, bq, 1), jnp.float32),            # running max
            pltpu.VMEM((n_head, bq, 1), jnp.float32),            # running sum
            pltpu.VMEM((n_head, bq, d_head), jnp.float32),       # output accumulator
        ],
        compiler_params=pltpu.CompilerParams(
            dimension_semantics=("parallel", "parallel", "arbitrary"),
            vmem_limit_bytes=vmem_limit),
    )(x, k, v, src_mask,
      params["wq"], params["wo"], params["w1"], params["w2"], vecs, params["b1"])


# ---------------------------------------------------------------------------
# Plain-JAX reference matching the torch module semantics (eval mode).
# ---------------------------------------------------------------------------
def reference(x, src_mask, p, n_head):
    B, S, D = x.shape
    dh = D // n_head
    eps = 1e-12

    def split_heads(t):
        return t.reshape(B, S, n_head, dh).transpose(0, 2, 1, 3)

    q = split_heads(x @ p["wq"] + p["bq"])
    k = split_heads(x @ p["wk"] + p["bk"])
    v = split_heads(x @ p["wv"] + p["bv"])
    scores = jnp.einsum("bhqd,bhkd->bhqk", q, k) / jnp.sqrt(jnp.float32(dh))
    scores = jnp.where(src_mask[:, None, :, :] == 0, -10000.0, scores)
    attn = jax.nn.softmax(scores, axis=-1)
    o = jnp.einsum("bhqk,bhkd->bhqd", attn, v).transpose(0, 2, 1, 3).reshape(B, S, D)
    o = o @ p["wo"] + p["bo"]

    def layernorm(t, g, b):
        mu = t.mean(-1, keepdims=True)
        var = ((t - mu) ** 2).mean(-1, keepdims=True)
        return (t - mu) / jnp.sqrt(var + eps) * g + b

    y = layernorm(x + o, p["gamma1"], p["beta1"])
    f = jnp.maximum(y @ p["w1"] + p["b1"], 0.0) @ p["w2"] + p["b2"]
    return layernorm(y + f, p["gamma2"], p["beta2"])


if __name__ == "__main__":
    B, S, D, HID, N_HEAD = 2, 8, 32, 64, 4

    key = jax.random.PRNGKey(0)
    ks = jax.random.split(key, 16)

    def w(k, shape, scale=0.05):
        return (scale * jax.random.normal(k, shape)).astype(jnp.float32)

    params = {
        "wq": w(ks[0], (D, D)), "bq": w(ks[1], (1, D)),
        "wk": w(ks[2], (D, D)), "bk": w(ks[3], (1, D)),
        "wv": w(ks[4], (D, D)), "bv": w(ks[5], (1, D)),
        "wo": w(ks[6], (D, D)), "bo": w(ks[7], (1, D)),
        "gamma1": jnp.ones((1, D), jnp.float32), "beta1": jnp.zeros((1, D), jnp.float32),
        "w1": w(ks[8], (D, HID)), "b1": w(ks[9], (1, HID)),
        "w2": w(ks[10], (HID, D)), "b2": w(ks[11], (1, D)),
        "gamma2": jnp.ones((1, D), jnp.float32), "beta2": jnp.zeros((1, D), jnp.float32),
    }

    x = jax.random.normal(ks[12], (B, S, D), dtype=jnp.float32)
    # padding-style mask built directly as int8: batch 0 attends to all 8
    # positions, batch 1 to the first 6 (no f32 mask ever materialized).
    lengths = jnp.array([8, 6])
    key_pos = jnp.arange(S)[None, None, :] < lengths[:, None, None]   # (B, 1, S)
    src_mask = jnp.broadcast_to(key_pos, (B, S, S)).astype(jnp.int8)

    ref = reference(x, src_mask, params, N_HEAD)

    # f32 intermediates: tight check (slack only for the approx reciprocal).
    out = jax.block_until_ready(encoder_block(x, src_mask, params, N_HEAD))
    assert out.shape == (B, S, D)
    assert jnp.allclose(out, ref, atol=5e-4, rtol=5e-4), "mismatch vs reference (f32)"

    # bf16 K/V/Q intermediates (halves the K/V HBM round-trip): looser check.
    out_bf16 = jax.block_until_ready(
        encoder_block(x, src_mask, params, N_HEAD, kv_dtype=jnp.bfloat16))
    assert jnp.allclose(out_bf16, ref, atol=3e-2, rtol=3e-2), "mismatch vs reference (bf16 K/V)"

    print("KERNEL_OK")
</pallas_src>

<mosaic_0001>
module attributes {stable_mosaic.version = 11 : i64} {
  func.func @kv_proj_kernel(%arg0: i32, %arg1: i32, %arg2: memref<1x8x32xf32, #tpu.memory_space<vmem>>, %arg3: memref<32x64xf32, #tpu.memory_space<vmem>>, %arg4: memref<1x64xf32, #tpu.memory_space<vmem>>, %arg5: memref<1x1x4x8x8xf32, #tpu.memory_space<vmem>>, %arg6: memref<1x1x4x8x8xf32, #tpu.memory_space<vmem>>) attributes {dimension_semantics = [#tpu.dimension_semantics<parallel>, #tpu.dimension_semantics<parallel>], iteration_bounds = array<i64: 2, 1>, scalar_prefetch = 0 : i64, scratch_operands = 0 : i64, tpu.core_type = #tpu.core_type<tc>, window_params = [{transform_indices = @transform_0, window_bounds = array<i64: 1, 8, 32>}, {pipeline_mode = #tpu.pipeline_mode<synchronous>, transform_indices = @transform_1, window_bounds = array<i64: 32, 64>}, {pipeline_mode = #tpu.pipeline_mode<synchronous>, transform_indices = @transform_2, window_bounds = array<i64: 1, 64>}, {transform_indices = @transform_3, window_bounds = array<i64: 1, 1, 4, 8, 8>}, {transform_indices = @transform_4, window_bounds = array<i64: 1, 1, 4, 8, 8>}]} {
    %c0 = arith.constant 0 : index
    %c0_0 = arith.constant 0 : index
    %c0_1 = arith.constant 0 : index
    %0 = vector.load %arg2[%c0, %c0_0, %c0_1] : memref<1x8x32xf32, #tpu.memory_space<vmem>>, vector<1x8x32xf32>
    %1 = vector.shape_cast %0 : vector<1x8x32xf32> to vector<8x32xf32>
    %c0_2 = arith.constant 0 : index
    %c0_3 = arith.constant 0 : index
    %2 = vector.load %arg3[%c0_2, %c0_3] : memref<32x64xf32, #tpu.memory_space<vmem>>, vector<32x64xf32>
    %cst = arith.constant dense<0.000000e+00> : vector<8x64xf32>
    %3 = tpu.matmul %1, %2, %cst {dimension_numbers = #tpu.dot_dimension_numbers<[1], [0], [0], [1], [0, 0, 1, 1], [], []>} : vector<8x32xf32>, vector<32x64xf32>, vector<8x64xf32> -> vector<8x64xf32>
    %c0_4 = arith.constant 0 : index
    %c0_5 = arith.constant 0 : index
    %4 = vector.load %arg4[%c0_4, %c0_5] : memref<1x64xf32, #tpu.memory_space<vmem>>, vector<1x64xf32>
    %5 = vector.broadcast %4 : vector<1x64xf32> to vector<8x64xf32>
    %6 = arith.addf %3, %5 : vector<8x64xf32>
    %7 = vector.extract_strided_slice %6 {offsets = [0, 0], sizes = [8, 32], strides = [1, 1]} : vector<8x64xf32> to vector<8x32xf32>
    %8 = vector.shape_cast %7 : vector<8x32xf32> to vector<8x4x8xf32>
    %9 = tpu.transpose %8, [1, 0, 2] : vector<8x4x8xf32> -> vector<4x8x8xf32>
    %c0_6 = arith.constant 0 : index
    %c0_7 = arith.constant 0 : index
    %c0_8 = arith.constant 0 : index
    %c0_9 = arith.constant 0 : index
    %c0_10 = arith.constant 0 : index
    %10 = vector.load %arg5[%c0_6, %c0_7, %c0_8, %c0_9, %c0_10] : memref<1x1x4x8x8xf32, #tpu.memory_space<vmem>>, vector<1x1x4x8x8xf32>
    %11 = vector.shape_cast %10 : vector<1x1x4x8x8xf32> to vector<4x8x8xf32>
    %12 = vector.shape_cast %9 : vector<4x8x8xf32> to vector<1x1x4x8x8xf32>
    tpu.vector_store %arg5[%c0_6, %c0_7, %c0_8, %c0_9, %c0_10], %12 {strides = array<i32>} : memref<1x1x4x8x8xf32, #tpu.memory_space<vmem>>, vector<1x1x4x8x8xf32>,
    %13 = vector.extract_strided_slice %6 {offsets = [0, 32], sizes = [8, 32], strides = [1, 1]} : vector<8x64xf32> to vector<8x32xf32>
    %14 = vector.shape_cast %13 : vector<8x32xf32> to vector<8x4x8xf32>
    %15 = tpu.transpose %14, [1, 0, 2] : vector<8x4x8xf32> -> vector<4x8x8xf32>
    %c0_11 = arith.constant 0 : index
    %c0_12 = arith.constant 0 : index
    %c0_13 = arith.constant 0 : index
    %c0_14 = arith.constant 0 : index
    %c0_15 = arith.constant 0 : index
    %16 = vector.load %arg6[%c0_11, %c0_12, %c0_13, %c0_14, %c0_15] : memref<1x1x4x8x8xf32, #tpu.memory_space<vmem>>, vector<1x1x4x8x8xf32>
    %17 = vector.shape_cast %16 : vector<1x1x4x8x8xf32> to vector<4x8x8xf32>
    %18 = vector.shape_cast %15 : vector<4x8x8xf32> to vector<1x1x4x8x8xf32>
    tpu.vector_store %arg6[%c0_11, %c0_12, %c0_13, %c0_14, %c0_15], %18 {strides = array<i32>} : memref<1x1x4x8x8xf32, #tpu.memory_space<vmem>>, vector<1x1x4x8x8xf32>,
    return
  }
  func.func @transform_0(%arg0: i32, %arg1: i32) -> (i32, i32, i32) {
    %c0_i32 = arith.constant 0 : i32
    %c0_i32_0 = arith.constant 0 : i32
    return %arg0, %arg1, %c0_i32 : i32, i32, i32
  }
  func.func @transform_1(%arg0: i32, %arg1: i32) -> (i32, i32) {
    %c0_i32 = arith.constant 0 : i32
    %c0_i32_0 = arith.constant 0 : i32
    %c0_i32_1 = arith.constant 0 : i32
    return %c0_i32, %c0_i32_0 : i32, i32
  }
  func.func @transform_2(%arg0: i32, %arg1: i32) -> (i32, i32) {
    %c0_i32 = arith.constant 0 : i32
    %c0_i32_0 = arith.constant 0 : i32
    %c0_i32_1 = arith.constant 0 : i32
    return %c0_i32, %c0_i32_0 : i32, i32
  }
  func.func @transform_3(%arg0: i32, %arg1: i32) -> (i32, i32, i32, i32, i32) {
    %c0_i32 = arith.constant 0 : i32
    %c0_i32_0 = arith.constant 0 : i32
    %c0_i32_1 = arith.constant 0 : i32
    %c0_i32_2 = arith.constant 0 : i32
    return %arg0, %arg1, %c0_i32, %c0_i32_0, %c0_i32_1 : i32, i32, i32, i32, i32
  }
  func.func @transform_4(%arg0: i32, %arg1: i32) -> (i32, i32, i32, i32, i32) {
    %c0_i32 = arith.constant 0 : i32
    %c0_i32_0 = arith.constant 0 : i32
    %c0_i32_1 = arith.constant 0 : i32
    %c0_i32_2 = arith.constant 0 : i32
    return %arg0, %arg1, %c0_i32, %c0_i32_0, %c0_i32_1 : i32, i32, i32, i32, i32
  }
}

</mosaic_0001>

<llo_original>
// kernel: tpu_custom_call.1
$region0: #{tpu_custom_call.1}
  #allocation0 [shape = 'u32[]', space=smem, size = 0x4, offset = 0x4, fixed_abs, tag = 'smem constant byte address 0x4 - core index']
  #allocation1 [shape = 'u32[72,128]{1,0:T(1,128)}', space=vmem, size = 0x9000, scoped, tag = 'internal scratch']
  %s0 = inlined_call_operand.hbm [shape: f32[2,8,32], index: 0, kind: input, shape index: {}]
  %s1 = inlined_call_operand.hbm [shape: f32[32,64], index: 1, kind: input, shape index: {}]
  %s2 = inlined_call_operand.vmem [shape: f32[1,64], index: 2, kind: input, shape index: {}]
  %s3 = inlined_call_operand.hbm [shape: f32[2,1,4,8,8], index: 3, kind: output, shape index: {0}]
  %s4 = inlined_call_operand.hbm [shape: f32[2,1,4,8,8], index: 4, kind: output, shape index: {1}]
  %5 = xla_tuple %s3, %s4
  %s6 = sld [smem:[#allocation0]]
  $region61: #{tpu_custom_call.1} parent=0
    _
  %s8 = ssub.s32 1, %s6
  %s9 = scalar_select 0, %s8, %s6
  $region1: #{tpu_custom_call.1} parent=0
    #allocation2 [shape = 'u8[8192]{0}', space=vmem, size = 0x2000, scoped, tag = 'input window, operand 0']
    #allocation3 [shape = 's32[2]{0}', space=sflag, size = 0x8, scoped, tag = 'scoped memory for tpu_custom_call.1']
    #allocation4 [shape = 's32[2]{0}', space=sflag, size = 0x8, scoped, tag = 'scoped memory for tpu_custom_call.1']
    #allocation5 [shape = 'u8[16384]{0}', space=vmem, size = 0x4000, scoped, tag = 'input window, operand 1, single buffered']
    #allocation6 [shape = 's32[1]{0}', space=sflag, size = 0x4, scoped, tag = 'scoped memory for tpu_custom_call.1']
    #allocation7 [shape = 'u8[32768]{0}', space=vmem, size = 0x8000, scoped, tag = 'output window, operand 0']
    #allocation8 [shape = 'u8[32768]{0}', space=vmem, size = 0x8000, scoped, tag = 'output window, operand 1']
    #allocation9 [shape = 's32[2]{0}', space=sflag, size = 0x8, scoped, tag = 'scoped memory for tpu_custom_call.1']
    %10 = vsyncpa [#allocation3], 0
    %s11 = scalar_lea.sflag [#allocation3], 1
    %12 = vsyncpa %s11, 0
    %13 = vsyncpa [#allocation6], 0
    %14 = vsyncpa [#allocation4], 0
    %s15 = scalar_lea.sflag [#allocation4], 1
    %16 = vsyncpa %s15, 0
    %17 = vsyncpa [#allocation9], 0
    %s18 = scalar_lea.sflag [#allocation9], 1
    %19 = vsyncpa %s18, 0
    loop: start=0, step=1, limit=4
    $region2: #{tpu_custom_call.1} parent=1 // loop_pre_header
      _
    $region3: #{tpu_custom_call.1} parent=1 // loop_header
      %s21 = sphi 0, %s25
      %p22 = scmp.ge.s32.totalorder %s21, 4
      %s28 = sphi 0, %s40
      %s29 = sphi 0, %s36
      %s30 = sphi 0, %s28
      %s31 = sphi 0, %s29
      %s32 = sphi 0, %s30
      %s33 = sphi 0, %s31
      %s45 = sphi 0, %s47
      %s48 = sphi 0, %s45
      %s49 = sphi 0, %s48
      %s65 = sphi 0, %s49
      %s69 = sphi 0, %s69
      %s71 = sphi 0, %s69
      %s72 = sphi 0, %s71
      %s86 = sphi 0, %s72
      %s90 = sphi 0, %s90
      %s92 = sphi 0, %s90
      %s93 = sphi 0, %s92
      %s107 = sphi 0, %s93
      %s115 = sphi 0, %s117
      %s118 = sphi 0, %s115
      %s119 = sphi 0, %s118
      %s135 = sphi 0, %s119
      %s143 = sphi 0, %s145
      %s146 = sphi 0, %s143
      %s147 = sphi 0, %s146
      %s163 = sphi 0, %s147
    $region4: #{tpu_custom_call.1} parent=1 // loop_header_branch
      %24 = sbr.rel (%p22) target = $region8
    $region5: #{tpu_custom_call.1} parent=1 // loop_body
      %s26 = ssub.s32 %s21, 1
      %s27 = ssub.s32 %s21, 2
      %s34 = sadd.s32 1, %s29
      %p35 = scmp.ge.s32.totalorder %s34, 1
      %s36 = scalar_select %p35, 0, %s34
      %s37 = sadd.s32 1, %s28
      %s38 = scalar_select %p35, %s37, %s28
      %p39 = scmp.ge.s32.totalorder %s38, 2
      %s40 = scalar_select %p39, 0, %s38
      %s41 = ssub.s32 %s28, %s40
      %s42 = ssub.s32 %s29, %s36
      %s43 = sor.u32 %s41, %s42
      %p44 = scmp.eq.s32.totalorder %s43, 0
      %s46 = sadd.s32 %s45, 1
      %s47 = scalar_select %p44, %s45, %s46
      %p50 = pneg %p44
      %p51 = scmp.eq.s32.totalorder %s21, 1
      %p52 = por %p50, %p51
      %p53 = scmp.ne.s32.totalorder %s45, %s48
      %p54 = scmp.eq.s32.totalorder %s21, 0
      %p55 = por %p53, %p54
      %p56 = scmp.ne.s32.totalorder %s45, %s48
      %p57 = scmp.eq.s32.totalorder %s26, 1
      %p58 = por %p56, %p57
      %p59 = scmp.ne.s32.totalorder %s48, %s49
      %p60 = scmp.eq.s32.totalorder %s26, 0
      %p61 = por %p59, %p60
      %p62 = scmp.ne.s32.totalorder %s48, %s49
      %p63 = scmp.eq.s32.totalorder %s27, 1
      %p64 = por %p62, %p63
      %p66 = scmp.ne.s32.totalorder %s49, %s65
      %p67 = scmp.eq.s32.totalorder %s27, 0
      %p68 = por %p66, %p67
      %s70 = sadd.s32 %s69, 1
      %p73 = scmp.eq.s32.totalorder %s21, 1
      %p74 = scmp.ne.s32.totalorder %s69, %s71
      %p75 = scmp.eq.s32.totalorder %s21, 0
      %p76 = por %p74, %p75
      %p77 = scmp.ne.s32.totalorder %s69, %s71
      %p78 = scmp.eq.s32.totalorder %s26, 1
      %p79 = por %p77, %p78
      %p80 = scmp.ne.s32.totalorder %s71, %s72
      %p81 = scmp.eq.s32.totalorder %s26, 0
      %p82 = por %p80, %p81
      %p83 = scmp.ne.s32.totalorder %s71, %s72
      %p84 = scmp.eq.s32.totalorder %s27, 1
      %p85 = por %p83, %p84
      %p87 = scmp.ne.s32.totalorder %s72, %s86
      %p88 = scmp.eq.s32.totalorder %s27, 0
      %p89 = por %p87, %p88
      %s91 = sadd.s32 %s90, 1
      %p94 = scmp.eq.s32.totalorder %s21, 1
      %p95 = scmp.ne.s32.totalorder %s90, %s92
      %p96 = scmp.eq.s32.totalorder %s21, 0
      %p97 = por %p95, %p96
      %p98 = scmp.ne.s32.totalorder %s90, %s92
      %p99 = scmp.eq.s32.totalorder %s26, 1
      %p100 = por %p98, %p99
      %p101 = scmp.ne.s32.totalorder %s92, %s93
      %p102 = scmp.eq.s32.totalorder %s26, 0
      %p103 = por %p101, %p102
      %p104 = scmp.ne.s32.totalorder %s92, %s93
      %p105 = scmp.eq.s32.totalorder %s27, 1
      %p106 = por %p104, %p105
      %p108 = scmp.ne.s32.totalorder %s93, %s107
      %p109 = scmp.eq.s32.totalorder %s27, 0
      %p110 = por %p108, %p109
      %s111 = ssub.s32 %s28, %s40
      %s112 = ssub.s32 %s29, %s36
      %s113 = sor.u32 %s111, %s112
      %p114 = scmp.eq.s32.totalorder %s113, 0
      %s116 = sadd.s32 %s115, 1
      %s117 = scalar_select %p114, %s115, %s116
      %p120 = pneg %p114
      %p121 = scmp.eq.s32.totalorder %s21, 1
      %p122 = por %p120, %p121
      %p123 = scmp.ne.s32.totalorder %s115, %s118
      %p124 = scmp.eq.s32.totalorder %s21, 0
      %p125 = por %p123, %p124
      %p126 = scmp.ne.s32.totalorder %s115, %s118
      %p127 = scmp.eq.s32.totalorder %s26, 1
      %p128 = por %p126, %p127
      %p129 = scmp.ne.s32.totalorder %s118, %s119
      %p130 = scmp.eq.s32.totalorder %s26, 0
      %p131 = por %p129, %p130
      %p132 = scmp.ne.s32.totalorder %s118, %s119
      %p133 = scmp.eq.s32.totalorder %s27, 1
      %p134 = por %p132, %p133
      %p136 = scmp.ne.s32.totalorder %s119, %s135
      %p137 = scmp.eq.s32.totalorder %s27, 0
      %p138 = por %p136, %p137
      %s139 = ssub.s32 %s28, %s40
      %s140 = ssub.s32 %s29, %s36
      %s141 = sor.u32 %s139, %s140
      %p142 = scmp.eq.s32.totalorder %s141, 0
      %s144 = sadd.s32 %s143, 1
      %s145 = scalar_select %p142, %s143, %s144
      %p148 = pneg %p142
      %p149 = scmp.eq.s32.totalorder %s21, 1
      %p150 = por %p148, %p149
      %p151 = scmp.ne.s32.totalorder %s143, %s146
      %p152 = scmp.eq.s32.totalorder %s21, 0
      %p153 = por %p151, %p152
      %p154 = scmp.ne.s32.totalorder %s143, %s146
      %p155 = scmp.eq.s32.totalorder %s26, 1
      %p156 = por %p154, %p155
      %p157 = scmp.ne.s32.totalorder %s146, %s147
      %p158 = scmp.eq.s32.totalorder %s26, 0
      %p159 = por %p157, %p158
      %p160 = scmp.ne.s32.totalorder %s146, %s147
      %p161 = scmp.eq.s32.totalorder %s27, 1
      %p162 = por %p160, %p161
      %p164 = scmp.ne.s32.totalorder %s147, %s163
      %p165 = scmp.eq.s32.totalorder %s27, 0
      %p166 = por %p164, %p165
      %p167 = scmp.le.s32.totalorder 1, %s21
      %p168 = scmp.lt.s32.totalorder %s21, 3
      %p169 = pnand %p167, %p168
      %p170 = pneg %p169
      // Predicated region
      $region9: #{tpu_custom_call.1} parent=5 // pred_check
        _
      $region10: #{tpu_custom_call.1} parent=5 // pred_check_branch
        %172 = sbr.rel (%p169) target = $region12
      $region11: #{tpu_custom_call.1} parent=5 // pred_region
        %s173 = ssub.s32 %s21, 1
        // Predicated region
        $region13: #{tpu_custom_call.1} parent=11 // pred_check
          %p174 = pneg %p82
        $region14: #{tpu_custom_call.1} parent=11 // pred_check_branch
          %176 = sbr.rel (%p174) target = $region16
        $region15: #{tpu_custom_call.1} parent=11 // pred_region
          %178 = vsyncadd [#allocation6], 0
          %s179 = sshll.u32 %s1, 4
          %s180 = int_to_ptr.hbm [resolvable:$true] %s179
          %s181 = sshll.u32 [#allocation5], 4
          %s182 = int_to_ptr.vmem [resolvable:$true] %s181
          %187 = dma.hbm_to_vmem [thread:$0]  %s180, 512, %s182, [#allocation6], 128, 128, 8
        $region16: #{tpu_custom_call.1} parent=11 // pred_fallthru
          _
        // Predicated region
        $region17: #{tpu_custom_call.1} parent=11 // pred_check
          %p188 = pneg %p103
        $region18: #{tpu_custom_call.1} parent=11 // pred_check_branch
          %190 = sbr.rel (%p188) target = $region20
        $region19: #{tpu_custom_call.1} parent=11 // pred_region
          _
        $region20: #{tpu_custom_call.1} parent=11 // pred_fallthru
          _
      $region12: #{tpu_custom_call.1} parent=5 // pred_fallthru
        _
      %p191 = scmp.lt.s32.totalorder %s21, 2
      // Predicated region
      $region21: #{tpu_custom_call.1} parent=5 // pred_check
        %p192 = pneg %p191
      $region22: #{tpu_custom_call.1} parent=5 // pred_check_branch
        %194 = sbr.rel (%p192) target = $region24
      $region23: #{tpu_custom_call.1} parent=5 // pred_region
        // Predicated region
        $region25: #{tpu_custom_call.1} parent=23 // pred_check
          %p195 = pneg %p55
        $region26: #{tpu_custom_call.1} parent=23 // pred_check_branch
          %197 = sbr.rel (%p195) target = $region28
        $region27: #{tpu_custom_call.1} parent=23 // pred_region
          %s198 = sand.u32 %s45, 1
          %s199 = scalar_lea.sflag [#allocation3], %s198
          %s200 = sand.u32 %s45, 1
          %s201 = smul.addr %s200, 8
          %s202 = scalar_lea.vmem [#allocation2], %s201
          %204 = vsyncadd %s199, 0
          %s205 = sadd.s32 %s29, %s28
          %s206 = smul.addr %s205, 8
          %s207 = scalar_lea.hbm %s0, %s206
          %s209 = sshll.u32 %s207, 4
          %s210 = int_to_ptr.hbm [resolvable:$true] %s209
          %s211 = sshll.u32 %s202, 4
          %s212 = int_to_ptr.vmem [resolvable:$true] %s211
          %214 = dma.hbm_to_vmem [thread:$0]  %s210, 128, %s212, %s199
        $region28: #{tpu_custom_call.1} parent=23 // pred_fallthru
          _
      $region24: #{tpu_custom_call.1} parent=5 // pred_fallthru
        _
      %p215 = scmp.le.s32.totalorder 1, %s21
      %p216 = scmp.lt.s32.totalorder %s21, 3
      %p217 = pnand %p215, %p216
      %p218 = pneg %p217
      // Predicated region
      $region29: #{tpu_custom_call.1} parent=5 // pred_check
        _
      $region30: #{tpu_custom_call.1} parent=5 // pred_check_branch
        %220 = sbr.rel (%p217) target = $region32
      $region31: #{tpu_custom_call.1} parent=5 // pred_region
        %s221 = ssub.s32 %s21, 1
        %s222 = sand.u32 %s48, 1
        %s223 = scalar_lea.sflag [#allocation3], %s222
        %s224 = sand.u32 %s48, 1
        %s225 = smul.addr %s224, 8
        %s226 = scalar_lea.vmem [#allocation2], %s225
        // Predicated region
        $region33: #{tpu_custom_call.1} parent=31 // pred_check
          %p227 = pneg %p61
        $region34: #{tpu_custom_call.1} parent=31 // pred_check_branch
          %229 = sbr.rel (%p227) target = $region36
        $region35: #{tpu_custom_call.1} parent=31 // pred_region
          %231 = dma.done %s223, 128
        $region36: #{tpu_custom_call.1} parent=31 // pred_fallthru
          _
        // Predicated region
        $region37: #{tpu_custom_call.1} parent=31 // pred_check
          %p232 = pneg %p82
        $region38: #{tpu_custom_call.1} parent=31 // pred_check_branch
          %234 = sbr.rel (%p232) target = $region40
        $region39: #{tpu_custom_call.1} parent=31 // pred_region
          %236 = dma.done [#allocation6], 512
        $region40: #{tpu_custom_call.1} parent=31 // pred_fallthru
          _
        %s237 = sand.u32 %s48, 1
        %s238 = scalar_lea.sflag [#allocation3], %s237
        %s239 = sand.u32 %s48, 1
        %s240 = smul.addr %s239, 8
        %s241 = scalar_lea.vmem [#allocation2], %s240
        %p242 = pneg %p61
        %p243 = pneg %p58
        %p244 = pneg %p82
        %p245 = pneg %p79
        %p246 = pneg %p103
        %p247 = pneg %p100
        %p248 = pneg %p131
        %p249 = pneg %p128
        %s250 = sand.u32 %s118, 1
        %s251 = scalar_lea.sflag [#allocation4], %s250
        %s252 = sand.u32 %s118, 1
        %s253 = smul.addr %s252, 32
        %s254 = scalar_lea.vmem [#allocation7], %s253
        %p255 = pneg %p159
        %p256 = pneg %p156
        %s257 = sand.u32 %s146, 1
        %s258 = scalar_lea.sflag [#allocation9], %s257
        %s259 = sand.u32 %s146, 1
        %s260 = smul.addr %s259, 32
        %s261 = scalar_lea.vmem [#allocation8], %s260
        %v262 = vld [vmem:[%s226] sm:$0xff]
        %v263 = vld [vmem:[#allocation5] sm:$0xff]
        %v264 = vld [vmem:[#allocation5 + $0x8] sm:$0xff]
        %v265 = vld [vmem:[#allocation5 + $0x10] sm:$0xff]
        %v266 = vld [vmem:[#allocation5 + $0x18] sm:$0xff]
        %v267 = vld [vmem:[%s2] sm:$0x1]
        %v269 = vperm.slane %v267, 0
        %vm271 = vcmask 261120
        %v273 = vsel %vm271, %v262, 0
        %275 = vmatpush.msra.mxu0 0.0
        %276 = vmatpush.msra.mxu0 0.0
        %277 = vmatpush.msra.mxu0 0.0
        %278 = vmatpush.msra.mxu0 0.0
        %279 = vmatpush.msra.mxu0 0.0
        %280 = vmatpush.msra.mxu0 0.0
        %281 = vmatpush.msra.mxu0 0.0
        %282 = vmatpush.msra.mxu0 0.0
        %283 = vmatpush.msra.mxu0 0.0
        %284 = vmatpush.msra.mxu0 0.0
        %285 = vmatpush.msra.mxu0 0.0
        %286 = vmatpush.msra.mxu0 0.0
        %287 = vmatpush.msra.mxu0 %v266
        %288 = vmatpush.msra.mxu0 %v265
        %289 = vmatpush.msra.mxu0 %v264
        %290 = vmatpush.msra.mxu0 %v263
        %291 = vmatmul.f32.gmra.mxu0 %v273
        %v292 = vpop.f32.mrf.mxu0
        %v293 = vadd.f32 %v269, %v292
        %294 = vdwg.mxu0
        %296 = vrot.lane.b32.xlu0 %v293, 120
        %v297 = vpop.permute.xlu0 %296
        %299 = vrot.lane.b32.xlu0 %v293, 112
        %v300 = vpop.permute.xlu0 %299
        %302 = vrot.lane.b32.xlu0 %v293, 104
        %v303 = vpop.permute.xlu0 %302
        %v305 = vrot.slane %v300, 4
        %vm306 = vcmask 1047556
        %v307 = vsel %vm306, %v305, %v293
        %v308 = vrot.slane %v293, 4
        %v309 = vsel %vm306, %v300, %v308
        %v311 = vunpack.c.l.s4 1983009808
        %v312 = vunpack.c.0.s8 %v311
        %v313 = vperm.slane %v307, %v312
        %v315 = vunpack.c.l.s4 1983009808
        %v316 = vunpack.c.0.s8 %v315
        %v317 = vperm.slane %v309, %v316
        %v318 = vrot.slane %v303, 4
        %v319 = vsel %vm306, %v318, %v297
        %v320 = vrot.slane %v297, 4
        %v321 = vsel %vm306, %v303, %v320
        %v323 = vunpack.c.l.s4 1983009808
        %v324 = vunpack.c.0.s8 %v323
        %v325 = vperm.slane %v319, %v324
        %v327 = vunpack.c.l.s4 1983009808
        %v328 = vunpack.c.0.s8 %v327
        %v329 = vperm.slane %v321, %v328
        %v330 = vrot.slane %v325, 4
        %v331 = vsel %vm306, %v330, %v313
        %v332 = vrot.slane %v313, 4
        %v333 = vsel %vm306, %v325, %v332
        %v335 = vunpack.c.l.s4 1934713408
        %v336 = vunpack.c.0.s8 %v335
        %v337 = vperm.slane %v331, %v336
        %v339 = vunpack.c.l.s4 1934713408
        %v340 = vunpack.c.0.s8 %v339
        %v341 = vperm.slane %v333, %v340
        %v342 = vrot.slane %v329, 4
        %v343 = vsel %vm306, %v342, %v317
        %v344 = vrot.slane %v317, 4
        %v345 = vsel %vm306, %v329, %v344
        %v347 = vunpack.c.l.s4 1934713408
        %v348 = vunpack.c.0.s8 %v347
        %v349 = vperm.slane %v343, %v348
        %v351 = vunpack.c.l.s4 1934713408
        %v352 = vunpack.c.0.s8 %v351
        %v353 = vperm.slane %v345, %v352
        %v354 = vrot.slane %v337, 4
        %v355 = vsel %vm306, 0.0, %v354
        %v356 = vrot.slane %v341, 4
        %v357 = vsel %vm306, 0.0, %v356
        %v358 = vrot.slane %v349, 4
        %v359 = vsel %vm306, 0.0, %v358
        %v360 = vrot.slane %v353, 4
        %v361 = vsel %vm306, 0.0, %v360
        %v362 = vsel %vm306, %v356, %v337
        %v364 = vunpack.c.l.s4 1983009808
        %v365 = vunpack.c.0.s8 %v364
        %v366 = vperm.slane %v362, %v365
        %v367 = vrot.slane %v357, 4
        %v368 = vsel %vm306, %v367, %v355
        %v370 = vunpack.c.l.s4 1983009808
        %v371 = vunpack.c.0.s8 %v370
        %v372 = vperm.slane %v368, %v371
        %v373 = vsel %vm306, %v360, %v349
        %v375 = vunpack.c.l.s4 1983009808
        %v376 = vunpack.c.0.s8 %v375
        %v377 = vperm.slane %v373, %v376
        %v378 = vrot.slane %v361, 4
        %v379 = vsel %vm306, %v378, %v359
        %v381 = vunpack.c.l.s4 1983009808
        %v382 = vunpack.c.0.s8 %v381
        %v383 = vperm.slane %v379, %v382
        %v384 = vrot.slane %v372, 4
        %v385 = vsel %vm306, %v384, %v366
        %v386 = vrot.slane %v366, 4
        %v387 = vsel %vm306, %v372, %v386
        %v389 = vunpack.c.l.s4 1934713408
        %v390 = vunpack.c.0.s8 %v389
        %v391 = vperm.slane %v385, %v390
        %v393 = vunpack.c.l.s4 1934713408
        %v394 = vunpack.c.0.s8 %v393
        %v395 = vperm.slane %v387, %v394
        %v396 = vrot.slane %v383, 4
        %v397 = vsel %vm306, %v396, %v377
        %v398 = vrot.slane %v377, 4
        %v399 = vsel %vm306, %v383, %v398
        %v401 = vunpack.c.l.s4 1934713408
        %v402 = vunpack.c.0.s8 %v401
        %v403 = vperm.slane %v397, %v402
        %v405 = vunpack.c.l.s4 1934713408
        %v406 = vunpack.c.0.s8 %v405
        %v407 = vperm.slane %v399, %v406
        %v408 = vrot.slane %v403, 4
        %v409 = vsel %vm306, %v408, %v391
        %v410 = vrot.slane %v391, 4
        %v411 = vsel %vm306, %v403, %v410
        %v412 = vrot.slane %v407, 4
        %v413 = vsel %vm306, %v412, %v395
        %v414 = vrot.slane %v395, 4
        %v415 = vsel %vm306, %v407, %v414
        %vm416 = vcmask 64512
        %417 = vst.msk [vmem:[%s254] sm:$0xff] %vm416, %v409
        %418 = vst.msk [vmem:[%s254 + $0x8] sm:$0xff] %vm416, %v411
        %419 = vst.msk [vmem:[%s254 + $0x10] sm:$0xff] %vm416, %v413
        %420 = vst.msk [vmem:[%s254 + $0x18] sm:$0xff] %vm416, %v415
        %421 = vrot.lane.b32.xlu0 %v293, 96
        %v422 = vpop.permute.xlu0 %421
        %423 = vrot.lane.b32.xlu0 %v297, 96
        %v424 = vpop.permute.xlu0 %423
        %425 = vrot.lane.b32.xlu0 %v300, 96
        %v426 = vpop.permute.xlu0 %425
        %427 = vrot.lane.b32.xlu0 %v303, 96
        %v428 = vpop.permute.xlu0 %427
        %v433 = vrot.slane %v426, 4
        %v434 = vsel %vm306, %v433, %v422
        %v435 = vrot.slane %v422, 4
        %v436 = vsel %vm306, %v426, %v435
        %v438 = vunpack.c.l.s4 1983009808
        %v439 = vunpack.c.0.s8 %v438
        %v440 = vperm.slane %v434, %v439
        %v442 = vunpack.c.l.s4 1983009808
        %v443 = vunpack.c.0.s8 %v442
        %v444 = vperm.slane %v436, %v443
        %v445 = vrot.slane %v428, 4
        %v446 = vsel %vm306, %v445, %v424
        %v447 = vrot.slane %v424, 4
        %v448 = vsel %vm306, %v428, %v447
        %v450 = vunpack.c.l.s4 1983009808
        %v451 = vunpack.c.0.s8 %v450
        %v452 = vperm.slane %v446, %v451
        %v454 = vunpack.c.l.s4 1983009808
        %v455 = vunpack.c.0.s8 %v454
        %v456 = vperm.slane %v448, %v455
        %v457 = vrot.slane %v452, 4
        %v458 = vsel %vm306, %v457, %v440
        %v459 = vrot.slane %v440, 4
        %v460 = vsel %vm306, %v452, %v459
        %v462 = vunpack.c.l.s4 1934713408
        %v463 = vunpack.c.0.s8 %v462
        %v464 = vperm.slane %v458, %v463
        %v466 = vunpack.c.l.s4 1934713408
        %v467 = vunpack.c.0.s8 %v466
        %v468 = vperm.slane %v460, %v467
        %v469 = vrot.slane %v456, 4
        %v470 = vsel %vm306, %v469, %v444
        %v471 = vrot.slane %v444, 4
        %v472 = vsel %vm306, %v456, %v471
        %v474 = vunpack.c.l.s4 1934713408
        %v475 = vunpack.c.0.s8 %v474
        %v476 = vperm.slane %v470, %v475
        %v478 = vunpack.c.l.s4 1934713408
        %v479 = vunpack.c.0.s8 %v478
        %v480 = vperm.slane %v472, %v479
        %v481 = vrot.slane %v464, 4
        %v482 = vsel %vm306, 0.0, %v481
        %v483 = vrot.slane %v468, 4
        %v484 = vsel %vm306, 0.0, %v483
        %v485 = vrot.slane %v476, 4
        %v486 = vsel %vm306, 0.0, %v485
        %v487 = vrot.slane %v480, 4
        %v488 = vsel %vm306, 0.0, %v487
        %v489 = vsel %vm306, %v483, %v464
        %v491 = vunpack.c.l.s4 1983009808
        %v492 = vunpack.c.0.s8 %v491
        %v493 = vperm.slane %v489, %v492
        %v494 = vrot.slane %v484, 4
        %v495 = vsel %vm306, %v494, %v482
        %v497 = vunpack.c.l.s4 1983009808
        %v498 = vunpack.c.0.s8 %v497
        %v499 = vperm.slane %v495, %v498
        %v500 = vsel %vm306, %v487, %v476
        %v502 = vunpack.c.l.s4 1983009808
        %v503 = vunpack.c.0.s8 %v502
        %v504 = vperm.slane %v500, %v503
        %v505 = vrot.slane %v488, 4
        %v506 = vsel %vm306, %v505, %v486
        %v508 = vunpack.c.l.s4 1983009808
        %v509 = vunpack.c.0.s8 %v508
        %v510 = vperm.slane %v506, %v509
        %v511 = vrot.slane %v499, 4
        %v512 = vsel %vm306, %v511, %v493
        %v513 = vrot.slane %v493, 4
        %v514 = vsel %vm306, %v499, %v513
        %v516 = vunpack.c.l.s4 1934713408
        %v517 = vunpack.c.0.s8 %v516
        %v518 = vperm.slane %v512, %v517
        %v520 = vunpack.c.l.s4 1934713408
        %v521 = vunpack.c.0.s8 %v520
        %v522 = vperm.slane %v514, %v521
        %v523 = vrot.slane %v510, 4
        %v524 = vsel %vm306, %v523, %v504
        %v525 = vrot.slane %v504, 4
        %v526 = vsel %vm306, %v510, %v525
        %v528 = vunpack.c.l.s4 1934713408
        %v529 = vunpack.c.0.s8 %v528
        %v530 = vperm.slane %v524, %v529
        %v532 = vunpack.c.l.s4 1934713408
        %v533 = vunpack.c.0.s8 %v532
        %v534 = vperm.slane %v526, %v533
        %v535 = vrot.slane %v530, 4
        %v536 = vsel %vm306, %v535, %v518
        %v537 = vrot.slane %v518, 4
        %v538 = vsel %vm306, %v530, %v537
        %v539 = vrot.slane %v534, 4
        %v540 = vsel %vm306, %v539, %v522
        %v541 = vrot.slane %v522, 4
        %v542 = vsel %vm306, %v534, %v541
        %543 = vst.msk [vmem:[%s261] sm:$0xff] %vm416, %v536
        %544 = vst.msk [vmem:[%s261 + $0x8] sm:$0xff] %vm416, %v538
        %545 = vst.msk [vmem:[%s261 + $0x10] sm:$0xff] %vm416, %v540
        %546 = vst.msk [vmem:[%s261 + $0x18] sm:$0xff] %vm416, %v542
        %s547 = sand.u32 %s118, 1
        %s548 = scalar_lea.sflag [#allocation4], %s547
        %s549 = sand.u32 %s118, 1
        %s550 = smul.addr %s549, 32
        %s551 = scalar_lea.vmem [#allocation7], %s550
        %s552 = sand.u32 %s146, 1
        %s553 = scalar_lea.sflag [#allocation9], %s552
        %s554 = sand.u32 %s146, 1
        %s555 = smul.addr %s554, 32
        %s556 = scalar_lea.vmem [#allocation8], %s555
        // Predicated region
        $region41: #{tpu_custom_call.1} parent=31 // pred_check
          %p557 = pneg %p128
        $region42: #{tpu_custom_call.1} parent=31 // pred_check_branch
          %559 = sbr.rel (%p557) target = $region44
        $region43: #{tpu_custom_call.1} parent=31 // pred_region
          %561 = vsyncadd %s548, 0
          %s562 = smul.addr %s31, 4
          %s563 = smul.addr %s30, 4
          %s564 = sadd.s32 %s562, %s563
          %s565 = smul.addr %s564, 8
          %s566 = scalar_lea.hbm %s3, %s565
          %s567 = sshll.u32 %s551, 4
          %s568 = int_to_ptr.vmem [resolvable:$true] %s567
          %s569 = sshll.u32 %s566, 4
          %s570 = int_to_ptr.hbm [resolvable:$true] %s569
          %575 = dma.vmem_to_hbm [thread:$0]  %s568, 512, %s570, %s548, 128, 128, 8
        $region44: #{tpu_custom_call.1} parent=31 // pred_fallthru
          _
        // Predicated region
        $region45: #{tpu_custom_call.1} parent=31 // pred_check
          %p576 = pneg %p156
        $region46: #{tpu_custom_call.1} parent=31 // pred_check_branch
          %578 = sbr.rel (%p576) target = $region48
        $region47: #{tpu_custom_call.1} parent=31 // pred_region
          %580 = vsyncadd %s553, 0
          %s581 = smul.addr %s31, 4
          %s582 = smul.addr %s30, 4
          %s583 = sadd.s32 %s581, %s582
          %s584 = smul.addr %s583, 8
          %s585 = scalar_lea.hbm %s4, %s584
          %s586 = sshll.u32 %s556, 4
          %s587 = int_to_ptr.vmem [resolvable:$true] %s586
          %s588 = sshll.u32 %s585, 4
          %s589 = int_to_ptr.hbm [resolvable:$true] %s588
          %594 = dma.vmem_to_hbm [thread:$0]  %s587, 512, %s589, %s553, 128, 128, 8
        $region48: #{tpu_custom_call.1} parent=31 // pred_fallthru
          _
      $region32: #{tpu_custom_call.1} parent=5 // pred_fallthru
        _
      %p595 = scmp.le.s32.totalorder 2, %s21
      // Predicated region
      $region49: #{tpu_custom_call.1} parent=5 // pred_check
        %p596 = pneg %p595
      $region50: #{tpu_custom_call.1} parent=5 // pred_check_branch
        %598 = sbr.rel (%p596) target = $region52
      $region51: #{tpu_custom_call.1} parent=5 // pred_region
        %s599 = ssub.s32 %s21, 2
        // Predicated region
        $region53: #{tpu_custom_call.1} parent=51 // pred_check
          %p600 = pneg %p134
        $region54: #{tpu_custom_call.1} parent=51 // pred_check_branch
          %602 = sbr.rel (%p600) target = $region56
        $region55: #{tpu_custom_call.1} parent=51 // pred_region
          %s603 = sand.u32 %s119, 1
          %s604 = scalar_lea.sflag [#allocation4], %s603
          %s605 = sand.u32 %s119, 1
          %s606 = smul.addr %s605, 32
          %s607 = scalar_lea.vmem [#allocation7], %s606
          %609 = dma.done %s604, 512
        $region56: #{tpu_custom_call.1} parent=51 // pred_fallthru
          _
        // Predicated region
        $region57: #{tpu_custom_call.1} parent=51 // pred_check
          %p610 = pneg %p162
        $region58: #{tpu_custom_call.1} parent=51 // pred_check_branch
          %612 = sbr.rel (%p610) target = $region60
        $region59: #{tpu_custom_call.1} parent=51 // pred_region
          %s613 = sand.u32 %s147, 1
          %s614 = scalar_lea.sflag [#allocation9], %s613
          %s615 = sand.u32 %s147, 1
          %s616 = smul.addr %s615, 32
          %s617 = scalar_lea.vmem [#allocation8], %s616
          %619 = dma.done %s614, 512
        $region60: #{tpu_custom_call.1} parent=51 // pred_fallthru
          _
      $region52: #{tpu_custom_call.1} parent=5 // pred_fallthru
        _
    $region6: #{tpu_custom_call.1} parent=1 // loop_footer
      %s25 = sadd.s32 1, %s21
    $region7: #{tpu_custom_call.1} parent=1 // loop_footer_branch
      %20 = sbr.rel target = $region3
    $region8: #{tpu_custom_call.1} parent=1 // loop_exit
      _
    %620 = vsyncpa [#allocation3], 1
    %s621 = scalar_lea.sflag [#allocation3], 1
    %622 = vsyncpa %s621, 1
    %623 = vsyncpa [#allocation6], 1
    %624 = vsyncpa [#allocation4], 1
    %s625 = scalar_lea.sflag [#allocation4], 1
    %626 = vsyncpa %s625, 1
    %627 = vsyncpa [#allocation9], 1
    %s628 = scalar_lea.sflag [#allocation9], 1
    %629 = vsyncpa %s628, 1

</llo_original>
